<compile_context>
chip_gen: v6e
topology: v6e:2x2x1
jax: 0.10.0
libtpu: 0.0.40
codegen_flags: <defaults>
</compile_context>

<pallas_src>
import math

import jax
import jax.numpy as jnp
from jax.experimental import pallas as pl
from jax.experimental.pallas import tpu as pltpu


def _round_up(x, m):
    return -(-x // m) * m


def _linear_bn_kernel(x_ref, w_ref, s_ref, b_ref, o_ref):
    # Full-K path: (TM, K)f32 -> bf16 cast (VPU) -> MXU matmul with f32 accumulation,
    # then fused BatchNorm affine (VPU).
    y = jnp.dot(x_ref[...].astype(jnp.bfloat16), w_ref[...],
                preferred_element_type=jnp.float32)
    o_ref[...] = y * s_ref[...] + b_ref[...]


def _linear_bn_kernel_ktiled(x_ref, w_ref, s_ref, b_ref, o_ref, acc_ref):
    # K-tiled path: accumulate partial matmuls in a VMEM f32 scratch, apply BN on the last step.
    k = pl.program_id(1)

    @pl.when(k == 0)
    def _():
        acc_ref[...] = jnp.zeros_like(acc_ref)

    acc_ref[...] += jnp.dot(x_ref[...].astype(jnp.bfloat16), w_ref[...],
                            preferred_element_type=jnp.float32)

    @pl.when(k == pl.num_programs(1) - 1)
    def _():
        o_ref[...] = acc_ref[...] * s_ref[...] + b_ref[...]


def feature_block_forward(x, w_t, scale, shift, *, tm_cap=256, tk_cap=2048):
    """y = BatchNorm1d(Linear(x)) with BN folded:  (x @ w_t) * scale + shift.

    x: (M, K) float32; w_t: (K, N) = Linear.weight.T; scale/shift: (N,) folded BN affine.
    """
    M, K = x.shape
    K2, N = w_t.shape
    assert K == K2 and scale.shape == (N,) and shift.shape == (N,)

    # ---- row (M) tiling: single tile for small batches, near-equal 8-aligned tiles otherwise.
    m_base = _round_up(max(M, 8), 8)
    nm = -(-m_base // max(_round_up(tm_cap, 8), 8))
    tm = _round_up(-(-m_base // nm), 8)
    Mp = tm * nm

    # ---- reduction (K) tiling: 128-aligned; split only when K exceeds tk_cap.
    k_base = _round_up(max(K, 128), 128)
    nk = -(-k_base // max(_round_up(tk_cap, 128), 128))
    tk = _round_up(-(-k_base // nk), 128)
    Kp = tk * nk

    # ---- feature (N) padding for lane-dense stores.
    Np = _round_up(max(N, 128), 128)

    # ---- pad operands (zeros in padded rows/cols do not affect the matmul; sliced off below).
    xp = x.astype(jnp.float32)
    if (Mp, Kp) != (M, K):
        xp = jnp.pad(xp, ((0, Mp - M), (0, Kp - K)))
    wb = w_t.astype(jnp.bfloat16)
    if (Kp, Np) != (K, N):
        wb = jnp.pad(wb, ((0, Kp - K), (0, Np - N)))
    s2 = scale.astype(jnp.float32).reshape(1, N)
    b2 = shift.astype(jnp.float32).reshape(1, N)
    if Np != N:
        s2 = jnp.pad(s2, ((0, 0), (0, Np - N)))
        b2 = jnp.pad(b2, ((0, 0), (0, Np - N)))

    if nk == 1:
        out = pl.pallas_call(
            _linear_bn_kernel,
            out_shape=jax.ShapeDtypeStruct((Mp, Np), jnp.float32),
            grid_spec=pltpu.PrefetchScalarGridSpec(
                num_scalar_prefetch=0,
                grid=(nm,),
                in_specs=[pl.BlockSpec((tm, Kp), lambda i: (i, 0)),
                          pl.BlockSpec((Kp, Np), lambda i: (0, 0)),
                          pl.BlockSpec((1, Np), lambda i: (0, 0)),
                          pl.BlockSpec((1, Np), lambda i: (0, 0))],
                out_specs=pl.BlockSpec((tm, Np), lambda i: (i, 0))),
            compiler_params=pltpu.CompilerParams(
                dimension_semantics=("parallel",)),
        )(xp, wb, s2, b2)
    else:
        out = pl.pallas_call(
            _linear_bn_kernel_ktiled,
            out_shape=jax.ShapeDtypeStruct((Mp, Np), jnp.float32),
            grid_spec=pltpu.PrefetchScalarGridSpec(
                num_scalar_prefetch=0,
                grid=(nm, nk),
                in_specs=[pl.BlockSpec((tm, tk), lambda i, k: (i, k)),
                          pl.BlockSpec((tk, Np), lambda i, k: (k, 0)),
                          pl.BlockSpec((1, Np), lambda i, k: (0, 0)),
                          pl.BlockSpec((1, Np), lambda i, k: (0, 0))],
                out_specs=pl.BlockSpec((tm, Np), lambda i, k: (i, 0)),
                scratch_shapes=[pltpu.VMEM((tm, Np), jnp.float32)]),
            compiler_params=pltpu.CompilerParams(
                dimension_semantics=("parallel", "arbitrary")),
        )(xp, wb, s2, b2)

    if Mp != M or Np != N:
        out = out[:M, :N]
    return out


def init_feature_block(key, input_dim, low_dim):
    """Mirror FeatureBlock.__init__ + weights_init_kaiming with deterministic synthetic init."""
    k1, k2 = jax.random.split(key)
    # Linear: kaiming_normal_(a=0, mode='fan_out') -> std = sqrt(2 / fan_out) = sqrt(2 / low_dim)
    w = jax.random.normal(k1, (low_dim, input_dim), jnp.float32) * math.sqrt(2.0 / low_dim)
    b = jnp.zeros((low_dim,), jnp.float32)                      # init.zeros_(bias)
    # BatchNorm1d: gamma ~ N(1, 0.01), beta = 0, fresh running stats (mean 0, var 1)
    gamma = 1.0 + 0.01 * jax.random.normal(k2, (low_dim,), jnp.float32)
    beta = jnp.zeros((low_dim,), jnp.float32)
    running_mean = jnp.zeros((low_dim,), jnp.float32)
    running_var = jnp.ones((low_dim,), jnp.float32)
    eps = 1e-5
    bn_scale = gamma / jnp.sqrt(running_var + eps)
    # BN(z) = (z - running_mean) * bn_scale + beta, with z = x @ w.T + b  =>  fold into affine:
    scale = bn_scale
    shift = (b - running_mean) * bn_scale + beta
    return {"w_t": jnp.transpose(w), "scale": scale, "shift": shift}


if __name__ == "__main__":
    key = jax.random.PRNGKey(0)
    kp, kx, kp2, kx2 = jax.random.split(key, 4)

    # ---- Test 1: common case (low_dim = 128 keeps output lane-dense, single grid step) ----
    batch, input_dim, low_dim = 32, 256, 128
    params = init_feature_block(kp, input_dim, low_dim)
    x = jax.random.normal(kx, (batch, input_dim), jnp.float32)

    fwd = jax.jit(lambda xx: feature_block_forward(
        xx, params["w_t"], params["scale"], params["shift"]))
    out = jax.block_until_ready(fwd(x))

    assert out.shape == (batch, low_dim), out.shape
    assert bool(jnp.all(jnp.isfinite(out)))
    ref = (x @ params["w_t"]) * params["scale"] + params["shift"]
    assert bool(jnp.allclose(out, ref, rtol=2e-2, atol=2e-2)), \
        float(jnp.max(jnp.abs(out - ref)))

    # ---- Test 2: exercise row-split, K-split (accumulator kernel) and M/K/N padding paths ----
    batch2, input_dim2, low_dim2 = 300, 200, 96
    params2 = init_feature_block(kp2, input_dim2, low_dim2)
    x2 = jax.random.normal(kx2, (batch2, input_dim2), jnp.float32)

    fwd2 = jax.jit(lambda xx: feature_block_forward(
        xx, params2["w_t"], params2["scale"], params2["shift"], tm_cap=128, tk_cap=128))
    out2 = jax.block_until_ready(fwd2(x2))

    assert out2.shape == (batch2, low_dim2), out2.shape
    assert bool(jnp.all(jnp.isfinite(out2)))
    ref2 = (x2 @ params2["w_t"]) * params2["scale"] + params2["shift"]
    assert bool(jnp.allclose(out2, ref2, rtol=2e-2, atol=2e-2)), \
        float(jnp.max(jnp.abs(out2 - ref2)))

    print("KERNEL_OK")
</pallas_src>

<mosaic_0001>
module attributes {stable_mosaic.version = 11 : i64} {
  func.func @_linear_bn_kernel(%arg0: i32, %arg1: memref<32x256xf32, #tpu.memory_space<vmem>>, %arg2: memref<256x128xbf16, #tpu.memory_space<vmem>>, %arg3: memref<1x128xf32, #tpu.memory_space<vmem>>, %arg4: memref<1x128xf32, #tpu.memory_space<vmem>>, %arg5: memref<32x128xf32, #tpu.memory_space<vmem>>) attributes {dimension_semantics = [#tpu.dimension_semantics<parallel>], iteration_bounds = array<i64: 1>, scalar_prefetch = 0 : i64, scratch_operands = 0 : i64, tpu.core_type = #tpu.core_type<tc>, window_params = [{transform_indices = @transform_0, window_bounds = array<i64: 32, 256>}, {pipeline_mode = #tpu.pipeline_mode<synchronous>, transform_indices = @transform_1, window_bounds = array<i64: 256, 128>}, {pipeline_mode = #tpu.pipeline_mode<synchronous>, transform_indices = @transform_2, window_bounds = array<i64: 1, 128>}, {pipeline_mode = #tpu.pipeline_mode<synchronous>, transform_indices = @transform_3, window_bounds = array<i64: 1, 128>}, {transform_indices = @transform_4, window_bounds = array<i64: 32, 128>}]} {
    %c0 = arith.constant 0 : index
    %c0_0 = arith.constant 0 : index
    %0 = vector.load %arg1[%c0, %c0_0] : memref<32x256xf32, #tpu.memory_space<vmem>>, vector<32x256xf32>
    %1 = arith.truncf %0 : vector<32x256xf32> to vector<32x256xbf16>
    %c0_1 = arith.constant 0 : index
    %c0_2 = arith.constant 0 : index
    %2 = vector.load %arg2[%c0_1, %c0_2] : memref<256x128xbf16, #tpu.memory_space<vmem>>, vector<256x128xbf16>
    %cst = arith.constant dense<0.000000e+00> : vector<32x128xf32>
    %3 = tpu.matmul %1, %2, %cst {dimension_numbers = #tpu.dot_dimension_numbers<[1], [0], [0], [1], [0, 0, 1, 1], [], []>} : vector<32x256xbf16>, vector<256x128xbf16>, vector<32x128xf32> -> vector<32x128xf32>
    %c0_3 = arith.constant 0 : index
    %c0_4 = arith.constant 0 : index
    %4 = vector.load %arg3[%c0_3, %c0_4] : memref<1x128xf32, #tpu.memory_space<vmem>>, vector<1x128xf32>
    %5 = vector.broadcast %4 : vector<1x128xf32> to vector<32x128xf32>
    %6 = arith.mulf %3, %5 : vector<32x128xf32>
    %c0_5 = arith.constant 0 : index
    %c0_6 = arith.constant 0 : index
    %7 = vector.load %arg4[%c0_5, %c0_6] : memref<1x128xf32, #tpu.memory_space<vmem>>, vector<1x128xf32>
    %8 = vector.broadcast %7 : vector<1x128xf32> to vector<32x128xf32>
    %9 = arith.addf %6, %8 : vector<32x128xf32>
    %c0_7 = arith.constant 0 : index
    %c0_8 = arith.constant 0 : index
    %10 = vector.load %arg5[%c0_7, %c0_8] : memref<32x128xf32, #tpu.memory_space<vmem>>, vector<32x128xf32>
    tpu.vector_store %arg5[%c0_7, %c0_8], %9 {strides = array<i32>} : memref<32x128xf32, #tpu.memory_space<vmem>>, vector<32x128xf32>,
    return
  }
  func.func @transform_0(%arg0: i32) -> (i32, i32) {
    %c0_i32 = arith.constant 0 : i32
    %c0_i32_0 = arith.constant 0 : i32
    return %arg0, %c0_i32 : i32, i32
  }
  func.func @transform_1(%arg0: i32) -> (i32, i32) {
    %c0_i32 = arith.constant 0 : i32
    %c0_i32_0 = arith.constant 0 : i32
    %c0_i32_1 = arith.constant 0 : i32
    return %c0_i32, %c0_i32_0 : i32, i32
  }
  func.func @transform_2(%arg0: i32) -> (i32, i32) {
    %c0_i32 = arith.constant 0 : i32
    %c0_i32_0 = arith.constant 0 : i32
    %c0_i32_1 = arith.constant 0 : i32
    return %c0_i32, %c0_i32_0 : i32, i32
  }
  func.func @transform_3(%arg0: i32) -> (i32, i32) {
    %c0_i32 = arith.constant 0 : i32
    %c0_i32_0 = arith.constant 0 : i32
    %c0_i32_1 = arith.constant 0 : i32
    return %c0_i32, %c0_i32_0 : i32, i32
  }
  func.func @transform_4(%arg0: i32) -> (i32, i32) {
    %c0_i32 = arith.constant 0 : i32
    %c0_i32_0 = arith.constant 0 : i32
    return %arg0, %c0_i32 : i32, i32
  }
}

</mosaic_0001>

<llo_original>
// kernel: _lambda_.1
$region0: #{_lambda_.1}
  #allocation0 [shape = 'u32[]', space=smem, size = 0x4, offset = 0x4, fixed_abs, tag = 'smem constant byte address 0x4 - core index']
  #allocation1 [shape = 'u32[144,128]{1,0:T(1,128)}', space=vmem, size = 0x12000, scoped, tag = 'internal scratch']
  %s0 = inlined_call_operand.hbm [shape: f32[32,256], index: 0, kind: input, shape index: {}]
  %s1 = inlined_call_operand.hbm [shape: bf16[256,128], index: 1, kind: input, shape index: {}]
  %s2 = inlined_call_operand.vmem [shape: f32[1,128], index: 2, kind: input, shape index: {}]
  %s3 = inlined_call_operand.vmem [shape: f32[1,128], index: 3, kind: input, shape index: {}]
  %s4 = inlined_call_operand.hbm [shape: f32[32,128], index: 4, kind: output, shape index: {}]
  %s5 = sld [smem:[#allocation0]]
  $region34: #{_lambda_.1} parent=0
    _
  %s7 = ssub.s32 1, %s5
  %s8 = scalar_select 0, %s7, %s5
  $region1: #{_lambda_.1} parent=0
    #allocation2 [shape = 'u8[32768]{0}', space=vmem, size = 0x8000, scoped, tag = 'input window, operand 0, single buffered']
    #allocation3 [shape = 's32[1]{0}', space=sflag, size = 0x4, scoped, tag = 'scoped memory for _lambda_.1']
    #allocation4 [shape = 's32[1]{0}', space=sflag, size = 0x4, scoped, tag = 'scoped memory for _lambda_.1']
    #allocation5 [shape = 'u8[65536]{0}', space=vmem, size = 0x10000, scoped, tag = 'input window, operand 1, single buffered']
    #allocation6 [shape = 's32[1]{0}', space=sflag, size = 0x4, scoped, tag = 'scoped memory for _lambda_.1']
    #allocation7 [shape = 'u8[16384]{0}', space=vmem, size = 0x4000, scoped, tag = 'output window, operand 0, single buffered']
    %9 = vsyncpa [#allocation3], 0
    %10 = vsyncpa [#allocation6], 0
    %11 = vsyncpa [#allocation4], 0
    // Predicated region
    $region2: #{_lambda_.1} parent=1 // pred_check
      _
    $region3: #{_lambda_.1} parent=1 // pred_check_branch
      %13 = sbr.rel (0) target = $region5
    $region4: #{_lambda_.1} parent=1 // pred_region
      %s15 = ssub.s32 1024, 1024
      %16 = vsyncadd [#allocation3], %s15
      %s17 = sshll.u32 [#allocation2], 4
      %s18 = int_to_ptr.vmem [resolvable:$true] %s17
      %23 = dma.hbm_to_vmem [thread:$0]  %s0, 1024, %s18, [#allocation3], 256, 256, 16
    $region5: #{_lambda_.1} parent=1 // pred_fallthru
      _
    // Predicated region
    $region6: #{_lambda_.1} parent=1 // pred_check
      _
    $region7: #{_lambda_.1} parent=1 // pred_check_branch
      %25 = sbr.rel (0) target = $region9
    $region8: #{_lambda_.1} parent=1 // pred_region
      %s27 = ssub.s32 2048, 2048
      %28 = vsyncadd [#allocation6], %s27
      %s29 = sshll.u32 [#allocation5], 4
      %s30 = int_to_ptr.vmem [resolvable:$true] %s29
      %35 = dma.hbm_to_vmem [thread:$0]  %s1, 2048, %s30, [#allocation6], 64, 64, 4
    $region9: #{_lambda_.1} parent=1 // pred_fallthru
      _
    // Predicated region
    $region10: #{_lambda_.1} parent=1 // pred_check
      _
    $region11: #{_lambda_.1} parent=1 // pred_check_branch
      %37 = sbr.rel (0) target = $region13
    $region12: #{_lambda_.1} parent=1 // pred_region
      _
    $region13: #{_lambda_.1} parent=1 // pred_fallthru
      _
    // Predicated region
    $region14: #{_lambda_.1} parent=1 // pred_check
      _
    $region15: #{_lambda_.1} parent=1 // pred_check_branch
      %39 = sbr.rel (0) target = $region17
    $region16: #{_lambda_.1} parent=1 // pred_region
      _
    $region17: #{_lambda_.1} parent=1 // pred_fallthru
      _
    // Predicated region
    $region18: #{_lambda_.1} parent=1 // pred_check
      _
    $region19: #{_lambda_.1} parent=1 // pred_check_branch
      %41 = sbr.rel (0) target = $region21
    $region20: #{_lambda_.1} parent=1 // pred_region
      %42 = dma.done [#allocation3], 1024
    $region21: #{_lambda_.1} parent=1 // pred_fallthru
      _
    // Predicated region
    $region22: #{_lambda_.1} parent=1 // pred_check
      _
    $region23: #{_lambda_.1} parent=1 // pred_check_branch
      %44 = sbr.rel (0) target = $region25
    $region24: #{_lambda_.1} parent=1 // pred_region
      %45 = dma.done [#allocation6], 2048
    $region25: #{_lambda_.1} parent=1 // pred_fallthru
      _
    %v47 = vld [vmem:[#allocation2] sm:$0xff]
    %v48 = vld [vmem:[#allocation2 + $0x8] sm:$0xff]
    %v49 = vld [vmem:[#allocation2 + $0x10] sm:$0xff]
    %v50 = vld [vmem:[#allocation2 + $0x18] sm:$0xff]
    %v51 = vld [vmem:[#allocation2 + $0x20] sm:$0xff]
    %v52 = vld [vmem:[#allocation2 + $0x28] sm:$0xff]
    %v53 = vld [vmem:[#allocation2 + $0x30] sm:$0xff]
    %v54 = vld [vmem:[#allocation2 + $0x38] sm:$0xff]
    %v55 = vpack.c.bf16 %v49, %v47
    %v56 = vpack.c.bf16 %v50, %v48
    %v57 = vpack.c.bf16 %v53, %v51
    %v58 = vpack.c.bf16 %v54, %v52
    %v59 = vld [vmem:[#allocation5] sm:$0xf]
    %v60 = vld [vmem:[#allocation5 + $0x4] sm:$0xf]
    %v61 = vld [vmem:[#allocation5 + $0x8] sm:$0xf]
    %v62 = vld [vmem:[#allocation5 + $0xc] sm:$0xf]
    %v63 = vld [vmem:[#allocation5 + $0x10] sm:$0xf]
    %v64 = vld [vmem:[#allocation5 + $0x14] sm:$0xf]
    %v65 = vld [vmem:[#allocation5 + $0x18] sm:$0xf]
    %v66 = vld [vmem:[#allocation5 + $0x1c] sm:$0xf]
    %v67 = vld [vmem:[#allocation5 + $0x20] sm:$0xf]
    %v68 = vld [vmem:[#allocation5 + $0x24] sm:$0xf]
    %v69 = vld [vmem:[#allocation5 + $0x28] sm:$0xf]
    %v70 = vld [vmem:[#allocation5 + $0x2c] sm:$0xf]
    %v71 = vld [vmem:[#allocation5 + $0x30] sm:$0xf]
    %v72 = vld [vmem:[#allocation5 + $0x34] sm:$0xf]
    %v73 = vld [vmem:[#allocation5 + $0x38] sm:$0xf]
    %v74 = vld [vmem:[#allocation5 + $0x3c] sm:$0xf]
    %v75 = vld [vmem:[#allocation5 + $0x40] sm:$0xf]
    %v76 = vld [vmem:[#allocation5 + $0x44] sm:$0xf]
    %v77 = vld [vmem:[#allocation5 + $0x48] sm:$0xf]
    %v78 = vld [vmem:[#allocation5 + $0x4c] sm:$0xf]
    %v79 = vld [vmem:[#allocation5 + $0x50] sm:$0xf]
    %v80 = vld [vmem:[#allocation5 + $0x54] sm:$0xf]
    %v81 = vld [vmem:[#allocation5 + $0x58] sm:$0xf]
    %v82 = vld [vmem:[#allocation5 + $0x5c] sm:$0xf]
    %v83 = vld [vmem:[#allocation5 + $0x60] sm:$0xf]
    %v84 = vld [vmem:[#allocation5 + $0x64] sm:$0xf]
    %v85 = vld [vmem:[#allocation5 + $0x68] sm:$0xf]
    %v86 = vld [vmem:[#allocation5 + $0x6c] sm:$0xf]
    %v87 = vld [vmem:[#allocation5 + $0x70] sm:$0xf]
    %v88 = vld [vmem:[#allocation5 + $0x74] sm:$0xf]
    %v89 = vld [vmem:[#allocation5 + $0x78] sm:$0xf]
    %v90 = vld [vmem:[#allocation5 + $0x7c] sm:$0xf]
    %v123 = vunpack.c.l.b16 %v59
    %v124 = vunpack.c.l.b16 %v60
    %v125 = vunpack.c.l.b16 %v61
    %v126 = vunpack.c.l.b16 %v62
    %v127 = vunpack.c.l.b16 %v63
    %v128 = vunpack.c.l.b16 %v64
    %v129 = vunpack.c.l.b16 %v65
    %v130 = vunpack.c.l.b16 %v66
    %v131 = vunpack.c.l.b16 %v67
    %v132 = vunpack.c.l.b16 %v68
    %v133 = vunpack.c.l.b16 %v69
    %v134 = vunpack.c.l.b16 %v70
    %v135 = vunpack.c.l.b16 %v71
    %v136 = vunpack.c.l.b16 %v72
    %v137 = vunpack.c.l.b16 %v73
    %v138 = vunpack.c.l.b16 %v74
    %v139 = vunpack.c.l.b16 %v75
    %v140 = vunpack.c.l.b16 %v76
    %v141 = vunpack.c.l.b16 %v77
    %v142 = vunpack.c.l.b16 %v78
    %v143 = vunpack.c.l.b16 %v79
    %v144 = vunpack.c.l.b16 %v80
    %v145 = vunpack.c.l.b16 %v81
    %v146 = vunpack.c.l.b16 %v82
    %v147 = vunpack.c.l.b16 %v83
    %v148 = vunpack.c.l.b16 %v84
    %v149 = vunpack.c.l.b16 %v85
    %v150 = vunpack.c.l.b16 %v86
    %v151 = vunpack.c.l.b16 %v87
    %v152 = vunpack.c.l.b16 %v88
    %v153 = vunpack.c.l.b16 %v89
    %v154 = vunpack.c.l.b16 %v90
    %v155 = vpack.c.b16 %v124, %v123
    %v156 = vpack.c.b16 %v126, %v125
    %v157 = vpack.c.b16 %v128, %v127
    %v158 = vpack.c.b16 %v130, %v129
    %v159 = vpack.c.b16 %v132, %v131
    %v160 = vpack.c.b16 %v134, %v133
    %v161 = vpack.c.b16 %v136, %v135
    %v162 = vpack.c.b16 %v138, %v137
    %v163 = vpack.c.b16 %v140, %v139
    %v164 = vpack.c.b16 %v142, %v141
    %v165 = vpack.c.b16 %v144, %v143
    %v166 = vpack.c.b16 %v146, %v145
    %v167 = vpack.c.b16 %v148, %v147
    %v168 = vpack.c.b16 %v150, %v149
    %v169 = vpack.c.b16 %v152, %v151
    %v170 = vpack.c.b16 %v154, %v153
    %187 = vmatprep.subr.bf16.mxu0 0
    %188 = vmatpush1.bf16.msra.mxu0 %v162
    %189 = vmatprep.subr.bf16.mxu0 0
    %190 = vmatpush1.bf16.msra.mxu0 %v161
    %191 = vmatprep.subr.bf16.mxu0 0
    %192 = vmatpush1.bf16.msra.mxu0 %v160
    %193 = vmatprep.subr.bf16.mxu0 0
    %194 = vmatpush1.bf16.msra.mxu0 %v159
    %195 = vmatprep.subr.bf16.mxu0 0
    %196 = vmatpush1.bf16.msra.mxu0 %v158
    %197 = vmatprep.subr.bf16.mxu0 0
    %198 = vmatpush1.bf16.msra.mxu0 %v157
    %199 = vmatprep.subr.bf16.mxu0 0
    %200 = vmatpush1.bf16.msra.mxu0 %v156
    %201 = vmatprep.subr.bf16.mxu0 0
    %202 = vmatpush1.bf16.msra.mxu0 %v155
    %203 = vmatprep.subr.bf16.mxu0 0
    %204 = vmatpush2.bf16.msra.mxu0 %v170
    %205 = vmatprep.subr.bf16.mxu0 0
    %206 = vmatpush2.bf16.msra.mxu0 %v169
    %207 = vmatprep.subr.bf16.mxu0 0
    %208 = vmatpush2.bf16.msra.mxu0 %v168
    %209 = vmatprep.subr.bf16.mxu0 0
    %210 = vmatpush2.bf16.msra.mxu0 %v167
    %211 = vmatprep.subr.bf16.mxu0 0
    %212 = vmatpush2.bf16.msra.mxu0 %v166
    %213 = vmatprep.subr.bf16.mxu0 0
    %214 = vmatpush2.bf16.msra.mxu0 %v165
    %215 = vmatprep.subr.bf16.mxu0 0
    %216 = vmatpush2.bf16.msra.mxu0 %v164
    %217 = vmatprep.subr.bf16.mxu0 0
    %218 = vmatpush2.bf16.msra.mxu0 %v163
    %219 = vmatprep.mubr.bf16.mxu0 %v56
    %220 = vmatmul.mubr.bf16.gmra.mxu0 %v55
    %v221 = vpop.f32.mrf.mxu0
    %v222 = vadd.f32 0.0, %v221
    %v223 = vpop.f32.mrf.mxu0
    %v224 = vpop.f32.mrf.mxu0
    %v225 = vadd.f32 0.0, %v224
    %v226 = vpop.f32.mrf.mxu0
    %227 = vmatprep.mubr.bf16.mxu0 %v58
    %228 = vmatmul.mubr.bf16.gmra.mxu0 %v57
    %v229 = vpop.f32.mrf.mxu0
    %v230 = vadd.f32 0.0, %v229
    %v231 = vpop.f32.mrf.mxu0
    %v232 = vpop.f32.mrf.mxu0
    %v233 = vadd.f32 0.0, %v232
    %v234 = vpop.f32.mrf.mxu0
    %235 = vdwg.mxu0
    %v236 = vld [vmem:[%s2] sm:$0x1]
    %v238 = vlaneseq
    %v239 = vshrl.u32 %v238, 7
    %v240 = vsub.s32 0, %v239
    %v241 = vrot.slane %v236, %v240
    %v243 = vmul.f32 %v222, %v241
    %v244 = vmul.f32 %v225, %v241
    %v245 = vmul.f32 %v230, %v241
    %v246 = vmul.f32 %v233, %v241
    %v247 = vld [vmem:[%s3] sm:$0x1]
    %v249 = vlaneseq
    %v250 = vshrl.u32 %v249, 7
    %v251 = vsub.s32 0, %v250
    %v252 = vrot.slane %v247, %v251
    %v254 = vadd.f32 %v243, %v252
    %v255 = vadd.f32 %v244, %v252
    %v256 = vadd.f32 %v245, %v252
    %v257 = vadd.f32 %v246, %v252
    %258 = vst [vmem:[#allocation7] sm:$0xff] %v254
    %259 = vst [vmem:[#allocation7 + $0x8] sm:$0xff] %v255
    %260 = vst [vmem:[#allocation7 + $0x10] sm:$0xff] %v256
    %261 = vst [vmem:[#allocation7 + $0x18] sm:$0xff] %v257
    // Predicated region
    $region26: #{_lambda_.1} parent=1 // pred_check
      _
    $region27: #{_lambda_.1} parent=1 // pred_check_branch
      %263 = sbr.rel (0) target = $region29
    $region28: #{_lambda_.1} parent=1 // pred_region
      %s265 = ssub.s32 512, 512
      %266 = vsyncadd [#allocation4], %s265
      %s267 = sshll.u32 [#allocation7], 4
      %s268 = int_to_ptr.vmem [resolvable:$true] %s267
      %273 = dma.vmem_to_hbm [thread:$0]  %s268, 512, %s4, [#allocation4], 128, 128, 8
    $region29: #{_lambda_.1} parent=1 // pred_fallthru
      _
    // Predicated region
    $region30: #{_lambda_.1} parent=1 // pred_check
      _
    $region31: #{_lambda_.1} parent=1 // pred_check_branch
      %275 = sbr.rel (0) target = $region33
    $region32: #{_lambda_.1} parent=1 // pred_region
      %276 = dma.done [#allocation4], 512
    $region33: #{_lambda_.1} parent=1 // pred_fallthru
      _
    %277 = vsyncpa [#allocation3], 1
    %278 = vsyncpa [#allocation6], 1
    %279 = vsyncpa [#allocation4], 1

</llo_original>
